<compile_context>
chip_gen: v7x
topology: tpu7x:2x2x1
jax: 0.10.0
libtpu: 0.0.40
codegen_flags: <defaults>
</compile_context>

<pallas_src>
import jax
import jax.numpy as jnp
import numpy as np
from jax import lax
from jax.experimental import pallas as pl
from jax.experimental.pallas import tpu as pltpu


def _round_up(x, m):
    return (x + m - 1) // m * m


def _patch_proj_kernel(p_ref, w_ref, pos_ref, o_ref):
    # p_ref:   (TILE_M, Pd)     bf16 patch rows (B*N collapsed, zero-padded)
    # w_ref:   (Pd, E_pad)      bf16 flattened conv weight (VMEM-resident)
    # pos_ref: (TILE_M, E_pad)  f32  pos-emb (+ conv bias) rows, tile-aligned
    # o_ref:   (TILE_M, E_pad)  f32  lane-dense output tile
    proj = jnp.dot(p_ref[...], w_ref[...],
                   preferred_element_type=jnp.float32)          # MXU, f32 acc
    o_ref[...] = (proj + pos_ref[...]).astype(o_ref.dtype)       # VPU, f32


def patch_embedding(x, w_conv, b_conv, cls_token, pos_emb, patch_size,
                    target_tile_m=256):
    """x: (B, C, H, W) NCHW float32. Returns (B, (H/p)*(W/p)+1, E) float32."""
    B, C, H, W = x.shape
    p = patch_size
    Hp, Wp = H // p, W // p
    N = Hp * Wp
    E = w_conv.shape[0]
    Pd = C * p * p

    # Padded dims: lane-dense output (E -> multiple of 128), sublane-friendly N.
    E_pad = _round_up(E, 128)
    N_pad = _round_up(N, 8)

    # ---- glue (plain JAX): im2col in bf16, weight / pos prep ----
    # TODO(synk): fuse the im2col into the kernel (index_map over (b, hp)
    # row-strips) to remove the extra HBM round trip of the patches tensor.
    xb = x.astype(jnp.bfloat16)
    # (B,C,Hp,p,Wp,p) -> (B,Hp,Wp,C,p,p) -> (B,N,C*p*p): channel-major per
    # patch, matching the flattened Conv2d weight (E,C,p,p) -> (Pd,E).
    patches = xb.reshape(B, C, Hp, p, Wp, p).transpose(0, 2, 4, 1, 3, 5)
    patches = patches.reshape(B, N, Pd)
    if N_pad != N:
        patches = jnp.pad(patches, ((0, 0), (0, N_pad - N), (0, 0)))

    w_mat = w_conv.reshape(E, Pd).T.astype(jnp.bfloat16)          # (Pd, E)
    if E_pad != E:
        w_mat = jnp.pad(w_mat, ((0, 0), (0, E_pad - E)))          # (Pd, E_pad)

    # Fold the conv bias into the patch-row positional embedding (f32).
    pos = pos_emb.reshape(N + 1, E).astype(jnp.float32)
    pos_rows = pos[1:] + b_conv.reshape(1, E)                     # (N, E)
    pos_rows = jnp.pad(pos_rows, ((0, N_pad - N), (0, E_pad - E)))

    # Collapse B*N into one M axis; one tile carries k whole images so the
    # resident pos tile lines up with the rows (pos[m % N_pad]).
    k = max(1, min(B, target_tile_m // N_pad))
    TILE_M = k * N_pad                                            # mult of 8
    B_pad = _round_up(B, k)
    if B_pad != B:
        patches = jnp.pad(patches, ((0, B_pad - B), (0, 0), (0, 0)))
    M_pad = B_pad * N_pad
    patches_2d = patches.reshape(M_pad, Pd)
    pos_tile = jnp.tile(pos_rows, (k, 1))                         # (TILE_M, E_pad)

    grid = (M_pad // TILE_M,)
    out = pl.pallas_call(
        _patch_proj_kernel,
        out_shape=jax.ShapeDtypeStruct((M_pad, E_pad), jnp.float32),
        grid_spec=pltpu.PrefetchScalarGridSpec(
            num_scalar_prefetch=0,
            grid=grid,
            in_specs=[
                pl.BlockSpec((TILE_M, Pd), lambda t: (t, 0)),
                pl.BlockSpec((Pd, E_pad), lambda t: (0, 0)),      # resident
                pl.BlockSpec((TILE_M, E_pad), lambda t: (0, 0)),  # resident
            ],
            out_specs=pl.BlockSpec((TILE_M, E_pad), lambda t: (t, 0)),
        ),
        compiler_params=pltpu.CompilerParams(
            dimension_semantics=("parallel",)),
    )(patches_2d, w_mat, pos_tile)

    # Un-pad, restore (B, N, E); prepend the batch-invariant cls row.
    out = out.reshape(B_pad, N_pad, E_pad)[:B, :N, :E]
    row0 = (cls_token.reshape(1, E).astype(jnp.float32) + pos[0:1])  # (1, E)
    row0 = jnp.broadcast_to(row0[None], (B, 1, E)).astype(out.dtype)
    return jnp.concatenate([row0, out], axis=1).astype(x.dtype)


def _reference(x, w_conv, b_conv, cls_token, pos_emb, patch_size):
    """Pure-JAX f32 reference mirroring the PyTorch forward."""
    B = x.shape[0]
    y = lax.conv_general_dilated(
        x, w_conv, window_strides=(patch_size, patch_size), padding="VALID",
        dimension_numbers=("NCHW", "OIHW", "NCHW"))
    y = y + b_conv.reshape(1, -1, 1, 1)
    B_, E, Hp, Wp = y.shape
    y = y.reshape(B_, E, Hp * Wp).transpose(0, 2, 1)   # flatten(2).transpose(1,2)
    cls = jnp.broadcast_to(cls_token, (B, 1, E))
    y = jnp.concatenate([cls, y], axis=1)
    return y + pos_emb


if __name__ == "__main__":
    # Config: img_size=16, vit_patch_size=4, vit_embed_dim=32, in_channels=3
    B, C, H, W = 2, 3, 16, 16
    patch_size = 4
    embed_dim = 32
    N = (H // patch_size) * (W // patch_size)              # 16 patches
    patch_dim = C * patch_size * patch_size                # 48

    key = jax.random.PRNGKey(0)
    kx, kw, kb, kc, kp = jax.random.split(key, 5)
    x = jax.random.normal(kx, (B, C, H, W), dtype=jnp.float32)
    w_conv = jax.random.normal(kw, (embed_dim, C, patch_size, patch_size),
                               dtype=jnp.float32) * 0.05
    b_conv = jax.random.normal(kb, (embed_dim,), dtype=jnp.float32) * 0.05
    cls_token = jax.random.normal(kc, (1, 1, embed_dim), dtype=jnp.float32)
    pos_emb = jax.random.normal(kp, (1, N + 1, embed_dim), dtype=jnp.float32)

    out = patch_embedding(x, w_conv, b_conv, cls_token, pos_emb, patch_size)
    out = jax.block_until_ready(out)

    ref = _reference(x, w_conv, b_conv, cls_token, pos_emb, patch_size)
    # bf16 matmul operands vs. f32 reference -> looser tolerance.
    np.testing.assert_allclose(np.asarray(out), np.asarray(ref),
                               rtol=2e-2, atol=2e-2)
    assert out.shape == (B, N + 1, embed_dim)
    print("KERNEL_OK")
</pallas_src>

<mosaic_0001>
module attributes {stable_mosaic.version = 11 : i64} {
  func.func @_patch_proj_kernel(%arg0: i32, %arg1: memref<32x48xbf16, #tpu.memory_space<vmem>>, %arg2: memref<48x128xbf16, #tpu.memory_space<vmem>>, %arg3: memref<32x128xf32, #tpu.memory_space<vmem>>, %arg4: memref<32x128xf32, #tpu.memory_space<vmem>>) attributes {dimension_semantics = [#tpu.dimension_semantics<parallel>], iteration_bounds = array<i64: 1>, scalar_prefetch = 0 : i64, scratch_operands = 0 : i64, tpu.core_type = #tpu.core_type<tc>, window_params = [{transform_indices = @transform_0, window_bounds = array<i64: 32, 48>}, {pipeline_mode = #tpu.pipeline_mode<synchronous>, transform_indices = @transform_1, window_bounds = array<i64: 48, 128>}, {pipeline_mode = #tpu.pipeline_mode<synchronous>, transform_indices = @transform_2, window_bounds = array<i64: 32, 128>}, {transform_indices = @transform_3, window_bounds = array<i64: 32, 128>}]} {
    %c0 = arith.constant 0 : index
    %c0_0 = arith.constant 0 : index
    %0 = vector.load %arg1[%c0, %c0_0] : memref<32x48xbf16, #tpu.memory_space<vmem>>, vector<32x48xbf16>
    %c0_1 = arith.constant 0 : index
    %c0_2 = arith.constant 0 : index
    %1 = vector.load %arg2[%c0_1, %c0_2] : memref<48x128xbf16, #tpu.memory_space<vmem>>, vector<48x128xbf16>
    %cst = arith.constant dense<0.000000e+00> : vector<32x128xf32>
    %2 = tpu.matmul %0, %1, %cst {dimension_numbers = #tpu.dot_dimension_numbers<[1], [0], [0], [1], [0, 0, 1, 1], [], []>} : vector<32x48xbf16>, vector<48x128xbf16>, vector<32x128xf32> -> vector<32x128xf32>
    %c0_3 = arith.constant 0 : index
    %c0_4 = arith.constant 0 : index
    %3 = vector.load %arg3[%c0_3, %c0_4] : memref<32x128xf32, #tpu.memory_space<vmem>>, vector<32x128xf32>
    %4 = arith.addf %2, %3 : vector<32x128xf32>
    %c0_5 = arith.constant 0 : index
    %c0_6 = arith.constant 0 : index
    %5 = vector.load %arg4[%c0_5, %c0_6] : memref<32x128xf32, #tpu.memory_space<vmem>>, vector<32x128xf32>
    tpu.vector_store %arg4[%c0_5, %c0_6], %4 {strides = array<i32>} : memref<32x128xf32, #tpu.memory_space<vmem>>, vector<32x128xf32>,
    return
  }
  func.func @transform_0(%arg0: i32) -> (i32, i32) {
    %c0_i32 = arith.constant 0 : i32
    %c0_i32_0 = arith.constant 0 : i32
    return %arg0, %c0_i32 : i32, i32
  }
  func.func @transform_1(%arg0: i32) -> (i32, i32) {
    %c0_i32 = arith.constant 0 : i32
    %c0_i32_0 = arith.constant 0 : i32
    %c0_i32_1 = arith.constant 0 : i32
    return %c0_i32, %c0_i32_0 : i32, i32
  }
  func.func @transform_2(%arg0: i32) -> (i32, i32) {
    %c0_i32 = arith.constant 0 : i32
    %c0_i32_0 = arith.constant 0 : i32
    %c0_i32_1 = arith.constant 0 : i32
    return %c0_i32, %c0_i32_0 : i32, i32
  }
  func.func @transform_3(%arg0: i32) -> (i32, i32) {
    %c0_i32 = arith.constant 0 : i32
    %c0_i32_0 = arith.constant 0 : i32
    return %arg0, %c0_i32 : i32, i32
  }
}

</mosaic_0001>

<llo_original>
// kernel: tpu_custom_call.1
$region0: #{tpu_custom_call.1}
  #allocation0 [shape = 'u32[]', space=smem, size = 0x4, offset = 0x4, fixed_abs, tag = 'smem constant byte address 0x4 - core index']
  #allocation1 [shape = 'u32[144,128]{1,0:T(1,128)}', space=vmem, size = 0x12000, scoped, tag = 'internal scratch']
  %s0 = inlined_call_operand.hbm [shape: bf16[32,48], index: 0, kind: input, shape index: {}]
  %s1 = inlined_call_operand.hbm [shape: bf16[48,128], index: 1, kind: input, shape index: {}]
  %s2 = inlined_call_operand.hbm [shape: f32[32,128], index: 2, kind: input, shape index: {}]
  %s3 = inlined_call_operand.hbm [shape: f32[32,128], index: 3, kind: output, shape index: {}]
  %s4 = sld [smem:[#allocation0]]
  $region34: #{tpu_custom_call.1} parent=0
    _
  %s6 = ssub.s32 1, %s4
  %s7 = scalar_select 0, %s6, %s4
  $region1: #{tpu_custom_call.1} parent=0
    #allocation2 [shape = 'u8[8192]{0}', space=vmem, size = 0x2000, scoped, tag = 'input window, operand 0, single buffered']
    #allocation3 [shape = 's32[1]{0}', space=sflag, size = 0x4, scoped, tag = 'scoped memory for tpu_custom_call.1']
    #allocation4 [shape = 's32[1]{0}', space=sflag, size = 0x4, scoped, tag = 'scoped memory for tpu_custom_call.1']
    #allocation5 [shape = 'u8[12288]{0}', space=vmem, size = 0x3000, scoped, tag = 'input window, operand 1, single buffered']
    #allocation6 [shape = 's32[1]{0}', space=sflag, size = 0x4, scoped, tag = 'scoped memory for tpu_custom_call.1']
    #allocation7 [shape = 'u8[16384]{0}', space=vmem, size = 0x4000, scoped, tag = 'input window, operand 2, single buffered']
    #allocation8 [shape = 'u8[16384]{0}', space=vmem, size = 0x4000, scoped, tag = 'output window, operand 0, single buffered']
    %8 = vsyncpa [#allocation3], 0
    %9 = vsyncpa [#allocation6], 0
    %10 = vsyncpa [#allocation4], 0
    // Predicated region
    $region2: #{tpu_custom_call.1} parent=1 // pred_check
      _
    $region3: #{tpu_custom_call.1} parent=1 // pred_check_branch
      %12 = sbr.rel (0) target = $region5
    $region4: #{tpu_custom_call.1} parent=1 // pred_region
      %s14 = ssub.s32 256, 256
      %15 = vsyncadd [#allocation3], %s14
      %s16 = sshll.u32 [#allocation2], 4
      %s17 = int_to_ptr.vmem [resolvable:$true] %s16
      %22 = dma.hbm_to_vmem [thread:$0]  %s0, 256, %s17, [#allocation3], 64, 64, 4
    $region5: #{tpu_custom_call.1} parent=1 // pred_fallthru
      _
    // Predicated region
    $region6: #{tpu_custom_call.1} parent=1 // pred_check
      _
    $region7: #{tpu_custom_call.1} parent=1 // pred_check_branch
      %24 = sbr.rel (0) target = $region9
    $region8: #{tpu_custom_call.1} parent=1 // pred_region
      %s26 = ssub.s32 384, 384
      %27 = vsyncadd [#allocation6], %s26
      %s28 = sshll.u32 [#allocation5], 4
      %s29 = int_to_ptr.vmem [resolvable:$true] %s28
      %34 = dma.hbm_to_vmem [thread:$0]  %s1, 384, %s29, [#allocation6], 64, 64, 4
    $region9: #{tpu_custom_call.1} parent=1 // pred_fallthru
      _
    // Predicated region
    $region10: #{tpu_custom_call.1} parent=1 // pred_check
      _
    $region11: #{tpu_custom_call.1} parent=1 // pred_check_branch
      %36 = sbr.rel (0) target = $region13
    $region12: #{tpu_custom_call.1} parent=1 // pred_region
      %s38 = ssub.s32 512, 512
      %39 = vsyncadd [#allocation6], %s38
      %s40 = sshll.u32 [#allocation7], 4
      %s41 = int_to_ptr.vmem [resolvable:$true] %s40
      %46 = dma.hbm_to_vmem [thread:$0]  %s2, 512, %s41, [#allocation6], 128, 128, 8
    $region13: #{tpu_custom_call.1} parent=1 // pred_fallthru
      _
    // Predicated region
    $region14: #{tpu_custom_call.1} parent=1 // pred_check
      _
    $region15: #{tpu_custom_call.1} parent=1 // pred_check_branch
      %48 = sbr.rel (0) target = $region17
    $region16: #{tpu_custom_call.1} parent=1 // pred_region
      %49 = dma.done [#allocation3], 256
    $region17: #{tpu_custom_call.1} parent=1 // pred_fallthru
      _
    // Predicated region
    $region18: #{tpu_custom_call.1} parent=1 // pred_check
      _
    $region19: #{tpu_custom_call.1} parent=1 // pred_check_branch
      %51 = sbr.rel (0) target = $region21
    $region20: #{tpu_custom_call.1} parent=1 // pred_region
      %52 = dma.done [#allocation6], 384
    $region21: #{tpu_custom_call.1} parent=1 // pred_fallthru
      _
    // Predicated region
    $region22: #{tpu_custom_call.1} parent=1 // pred_check
      _
    $region23: #{tpu_custom_call.1} parent=1 // pred_check_branch
      %54 = sbr.rel (0) target = $region25
    $region24: #{tpu_custom_call.1} parent=1 // pred_region
      %55 = dma.done [#allocation6], 512
    $region25: #{tpu_custom_call.1} parent=1 // pred_fallthru
      _
    %v57 = vld [vmem:[#allocation2] sm:$0xf]
    %v58 = vld [vmem:[#allocation2 + $0x4] sm:$0xf]
    %v59 = vld [vmem:[#allocation2 + $0x8] sm:$0xf]
    %v60 = vld [vmem:[#allocation2 + $0xc] sm:$0xf]
    %v61 = vld [vmem:[#allocation5] sm:$0xf]
    %v62 = vld [vmem:[#allocation5 + $0x4] sm:$0xf]
    %v63 = vld [vmem:[#allocation5 + $0x8] sm:$0xf]
    %v64 = vld [vmem:[#allocation5 + $0xc] sm:$0xf]
    %v65 = vld [vmem:[#allocation5 + $0x10] sm:$0xf]
    %v66 = vld [vmem:[#allocation5 + $0x14] sm:$0xf]
    %v67 = vld [vmem:[#allocation7] sm:$0xff]
    %v68 = vld [vmem:[#allocation7 + $0x8] sm:$0xff]
    %v69 = vld [vmem:[#allocation7 + $0x10] sm:$0xff]
    %v70 = vld [vmem:[#allocation7 + $0x18] sm:$0xff]
    %v75 = vunpack.c.l.b16 %v57
    %v76 = vunpack.c.l.b16 %v58
    %v77 = vunpack.c.l.b16 %v59
    %v78 = vunpack.c.l.b16 %v60
    %v79 = vpack.c.b16 %v76, %v75
    %v80 = vpack.c.b16 %v78, %v77
    %v87 = vunpack.c.l.b16 %v61
    %v88 = vunpack.c.l.b16 %v62
    %v89 = vunpack.c.l.b16 %v63
    %v90 = vunpack.c.l.b16 %v64
    %v91 = vunpack.c.l.b16 %v65
    %v92 = vunpack.c.l.b16 %v66
    %v93 = vpack.c.b16 %v88, %v87
    %v94 = vpack.c.b16 %v90, %v89
    %v95 = vpack.c.b16 %v92, %v91
    %vm99 = vcmask 392192
    %v101 = vsel %vm99, %v79, 0
    %v104 = vsel %vm99, %v80, 0
    %106 = vmatprep.subr.bf16.mxu0 0
    %107 = vmatpush1.bf16.msra.mxu0 %v93
    %108 = vmatprep.subr.bf16.mxu0 0
    %109 = vmatpush1.bf16.msra.mxu0 %v94
    %110 = vmatprep.subr.bf16.mxu0 0
    %111 = vmatpush1.bf16.msra.mxu0 %v95
    %112 = vmatprep.subr.bf16.mxu0 0
    %113 = vmatpush1.bf16.msra.mxu0 0
    %114 = vmatprep.subr.bf16.mxu0 0
    %115 = vmatpush1.bf16.msra.mxu0 0
    %116 = vmatprep.subr.bf16.mxu0 0
    %117 = vmatpush1.bf16.msra.mxu0 0
    %118 = vmatprep.subr.bf16.mxu0 0
    %119 = vmatpush1.bf16.msra.mxu0 0
    %120 = vmatprep.subr.bf16.mxu0 0
    %121 = vmatpush1.bf16.msra.mxu0 0
    %122 = vmatprep.subr.bf16.mxu0 0
    %123 = vmatpush1.bf16.msra.mxu0 0
    %124 = vmatprep.subr.bf16.mxu0 0
    %125 = vmatpush1.bf16.msra.mxu0 0
    %126 = vmatprep.subr.bf16.mxu0 0
    %127 = vmatpush1.bf16.msra.mxu0 0
    %128 = vmatprep.subr.bf16.mxu0 0
    %129 = vmatpush1.bf16.msra.mxu0 0
    %130 = vmatprep.subr.bf16.mxu0 0
    %131 = vmatpush1.bf16.msra.mxu0 0
    %132 = vmatprep.subr.bf16.mxu0 0
    %133 = vmatpush1.bf16.msra.mxu0 0
    %134 = vmatprep.subr.bf16.mxu0 0
    %135 = vmatpush1.bf16.msra.mxu0 0
    %136 = vmatprep.subr.bf16.mxu0 0
    %137 = vmatpush1.bf16.msra.mxu0 0
    %138 = vmatprep.mubr.bf16.mxu0 0
    %139 = vmatmul.mubr.bf16.gmra.mrb[0].mxu0 %v101
    %v140 = vpop.f32.mrb[0].mxu0
    %v141 = vadd.f32 %v67, %v140
    %v142 = vpop.f32.mrb[0].mxu0
    %v143 = vpop.f32.mrb[0].mxu0
    %v144 = vadd.f32 %v68, %v143
    %v145 = vpop.f32.mrb[0].mxu0
    %146 = vmatprep.mubr.bf16.mxu0 0
    %147 = vmatmul.mubr.bf16.gmra.mrb[0].mxu0 %v104
    %v148 = vpop.f32.mrb[0].mxu0
    %v149 = vadd.f32 %v69, %v148
    %v150 = vpop.f32.mrb[0].mxu0
    %v151 = vpop.f32.mrb[0].mxu0
    %v152 = vadd.f32 %v70, %v151
    %v153 = vpop.f32.mrb[0].mxu0
    %154 = vdwg.mxu0
    %155 = vst [vmem:[#allocation8] sm:$0xff] %v141
    %156 = vst [vmem:[#allocation8 + $0x8] sm:$0xff] %v144
    %157 = vst [vmem:[#allocation8 + $0x10] sm:$0xff] %v149
    %158 = vst [vmem:[#allocation8 + $0x18] sm:$0xff] %v152
    // Predicated region
    $region26: #{tpu_custom_call.1} parent=1 // pred_check
      _
    $region27: #{tpu_custom_call.1} parent=1 // pred_check_branch
      %160 = sbr.rel (0) target = $region29
    $region28: #{tpu_custom_call.1} parent=1 // pred_region
      %s162 = ssub.s32 512, 512
      %163 = vsyncadd [#allocation4], %s162
      %s164 = sshll.u32 [#allocation8], 4
      %s165 = int_to_ptr.vmem [resolvable:$true] %s164
      %170 = dma.vmem_to_hbm [thread:$0]  %s165, 512, %s3, [#allocation4], 128, 128, 8
    $region29: #{tpu_custom_call.1} parent=1 // pred_fallthru
      _
    // Predicated region
    $region30: #{tpu_custom_call.1} parent=1 // pred_check
      _
    $region31: #{tpu_custom_call.1} parent=1 // pred_check_branch
      %172 = sbr.rel (0) target = $region33
    $region32: #{tpu_custom_call.1} parent=1 // pred_region
      %173 = dma.done [#allocation4], 512
    $region33: #{tpu_custom_call.1} parent=1 // pred_fallthru
      _
    %174 = vsyncpa [#allocation3], 1
    %175 = vsyncpa [#allocation6], 1
    %176 = vsyncpa [#allocation4], 1

</llo_original>
